<compile_context>
chip_gen: v6e
topology: v6e:2x2x1
jax: 0.10.0
libtpu: 0.0.40
codegen_flags: <defaults>
</compile_context>

<pallas_src>
import jax
import jax.numpy as jnp
from jax.experimental import pallas as pl
from jax.experimental.pallas import tpu as pltpu


def value_head_kernel(x_ref, scal_ref, w1t_ref, b1w2_ref, out_ref):
    # x_ref : (TB, C*HW) f32  -- channel c lives at lanes [c*HW, (c+1)*HW)
    # scal  : (C+2,) f32 SMEM -- [w_eff(0..C-1), b_eff, b2]
    # w1t   : (HW, 64) f32    -- fc1 weight, transposed, VMEM-resident across grid steps
    # b1w2  : (2, 64) f32     -- row 0: fc1 bias, row 1: fc2 weight
    # out   : (TB, 1) f32
    HW = w1t_ref.shape[0]
    C = x_ref.shape[1] // HW

    # 1x1 conv with folded BatchNorm(eval): per-channel multiply-accumulate on the VPU over
    # lane-aligned slices (HW is a multiple of 128 -> full-width, unmasked vlds).
    # f32 throughout (v5e VALU has no bf16). Roofline check (TB=2048, C=4, HW=256):
    # ~9 VPU passes over a (TB, HW) f32 tile ~= 1.2 us, vs >= 2.5 us x-tile DMA even at
    # v7x's ~3.2 TB/s -> the VPU MAC stays hidden under the DMA on all three generations,
    # so no need to move the conv onto the MXU.
    acc = x_ref[:, 0:HW] * scal_ref[0]
    for c in range(1, C):
        acc = acc + x_ref[:, c * HW:(c + 1) * HW] * scal_ref[c]
    h = jnp.maximum(acc + scal_ref[C], 0.0)                           # (TB, HW) ReLU

    # fc1 on the MXU, f32 with f32 accumulation (~67 MFLOP at TB=2048: far below DMA time;
    # keeping h in f32 avoids the extra bf16 rounding step vs. the PyTorch module).
    h1 = jnp.dot(h, w1t_ref[...], preferred_element_type=jnp.float32) + b1w2_ref[0:1, :]
    h1 = jnp.maximum(h1, 0.0)                                         # (TB, 64)

    # fc2 (out_features=1): VPU multiply + lane reduce; an N=1 MXU matmul is pure drain
    # overhead here.
    y = jnp.sum(h1 * b1w2_ref[1:2, :], axis=-1, keepdims=True) + scal_ref[C + 1]
    out_ref[...] = jnp.tanh(y)                                        # (TB, 1)


def _fold_params(raw):
    """Fold eval-mode BatchNorm + conv bias into the 1x1 conv and pack kernel operands."""
    scale = raw["bn_gamma"] / jnp.sqrt(raw["bn_var"] + raw["bn_eps"])
    shift = raw["bn_beta"] - raw["bn_mean"] * scale
    w_eff = raw["w_conv"].reshape(-1) * scale                         # (C,)
    b_eff = raw["b_conv"] * scale + shift                             # ()
    scal = jnp.concatenate(
        [w_eff, jnp.reshape(b_eff, (1,)), raw["b2"].reshape(1)]
    ).astype(jnp.float32)                                             # (C+2,) -> SMEM
    return dict(
        scal=scal,
        w1t=raw["w1"].T.astype(jnp.float32),                          # (HW, 64)
        b1w2=jnp.stack([raw["b1"], raw["w2"][0]]).astype(jnp.float32),  # (2, 64)
    )


def _choose_batch_tile(batch):
    # Tiny batches: one full-batch tile (nothing useful to split below a vreg's 8 sublanes).
    if batch <= 128:
        return batch
    # Otherwise: at least 2 grid steps so v7x's two TensorCores both get work, tile rows
    # 128-aligned (f32 sublane tiling / v5e MXU), capped at 2048 rows -> 8 MiB f32 x-tile
    # at C*HW=1024 (16 MiB double-buffered + ~3 MiB f32 temporaries < 48 MiB VMEM budget,
    # safe on v7x's 64 MiB and comfortably in the ~85%-of-roofline tile-size regime).
    half = -(-batch // 2)
    tile = -(-half // 128) * 128
    return min(tile, 2048)


@jax.jit
def value_head_forward(x_nchw, raw_params):
    B, C, H, W = x_nchw.shape
    HW = H * W
    CHW = C * HW
    p = _fold_params(raw_params)

    # Free, contiguous reshape; NO dtype cast (the kernel consumes f32 straight from HBM).
    x2 = x_nchw.reshape(B, CHW)

    TB = _choose_batch_tile(B)
    grid = (pl.cdiv(B, TB),)
    smem = pltpu.MemorySpace.SMEM

    return pl.pallas_call(
        value_head_kernel,
        out_shape=jax.ShapeDtypeStruct((B, 1), jnp.float32),
        grid=grid,
        in_specs=[
            pl.BlockSpec((TB, CHW), lambda i: (i, 0)),    # x: tiled over batch only
            pl.BlockSpec(memory_space=smem),              # scal (C+2,) scalar params
            pl.BlockSpec((HW, 64), lambda i: (0, 0)),     # w1t: VMEM-resident across iters
            pl.BlockSpec((2, 64), lambda i: (0, 0)),      # [b1; w2]: VMEM-resident
        ],
        out_specs=pl.BlockSpec((TB, 1), lambda i: (i, 0)),
        compiler_params=pltpu.CompilerParams(
            dimension_semantics=("parallel",),            # v7x: shard batch tiles across 2 TCs
            vmem_limit_bytes=48 * 1024 * 1024,            # > v5e/v6e 32 MiB default, < v7x 64 MiB
        ),
    )(x2, p["scal"], p["w1t"], p["b1w2"])


def make_params(key, in_channels, in_features):
    ks = jax.random.split(key, 6)
    return dict(
        # Conv2d(in_channels, 1, kernel_size=1) weight squeezed to (1, C); bias scalar.
        w_conv=jax.random.normal(ks[0], (1, in_channels), jnp.float32) * 0.1,
        b_conv=jax.random.normal(ks[1], (), jnp.float32) * 0.1,
        # BatchNorm2d(1), eval-mode running stats / affine (non-trivial to exercise folding).
        # TODO(synk): training-mode BN (batch statistics) not reproduced; eval mode only.
        bn_gamma=jnp.float32(1.3),
        bn_beta=jnp.float32(0.2),
        bn_mean=jnp.float32(0.1),
        bn_var=jnp.float32(0.8),
        bn_eps=jnp.float32(1e-5),
        w1=jax.random.normal(ks[2], (64, in_features), jnp.float32) * 0.05,   # (out, in)
        b1=jax.random.normal(ks[3], (64,), jnp.float32) * 0.05,
        w2=jax.random.normal(ks[4], (1, 64), jnp.float32) * 0.05,             # (out, in)
        b2=jax.random.normal(ks[5], (1,), jnp.float32) * 0.05,
    )


def reference_forward(x_nchw, raw):
    # Pure-JAX f32 reference of the PyTorch module (eval mode).
    B = x_nchw.shape[0]
    conv = jnp.einsum("bchw,c->bhw", x_nchw, raw["w_conv"][0]) + raw["b_conv"]
    scale = raw["bn_gamma"] / jnp.sqrt(raw["bn_var"] + raw["bn_eps"])
    shift = raw["bn_beta"] - raw["bn_mean"] * scale
    h = jnp.maximum(conv * scale + shift, 0.0).reshape(B, -1)
    h1 = jnp.maximum(h @ raw["w1"].T + raw["b1"][None, :], 0.0)
    y = h1 @ raw["w2"].T + raw["b2"][None, :]
    return jnp.tanh(y)


if __name__ == "__main__":
    C, H, W = 4, 16, 16
    key = jax.random.PRNGKey(0)
    kx, kp, kx2 = jax.random.split(key, 3)
    raw = make_params(kp, C, H * W)

    # Primary small-shape check (single tile).
    B = 2
    x = jax.random.normal(kx, (B, C, H, W), jnp.float32)
    out = jax.block_until_ready(value_head_forward(x, raw))
    ref = reference_forward(x, raw)
    assert out.shape == (B, 1)
    assert jnp.allclose(out, ref, atol=1e-2, rtol=1e-2), (out, ref)

    # Secondary check: multi-tile grid with a partial last block (exercises the batch
    # tiling / "parallel" path; padded rows are computed on but discarded on writeback).
    B2 = 260
    x2 = jax.random.normal(kx2, (B2, C, H, W), jnp.float32)
    out2 = jax.block_until_ready(value_head_forward(x2, raw))
    ref2 = reference_forward(x2, raw)
    assert out2.shape == (B2, 1)
    assert jnp.allclose(out2, ref2, atol=1e-2, rtol=1e-2)

    print("KERNEL_OK")
</pallas_src>

<mosaic_0001>
module attributes {stable_mosaic.version = 11 : i64} {
  func.func @value_head_kernel(%arg0: i32, %arg1: memref<2x1024xf32, #tpu.memory_space<vmem>>, %arg2: memref<6xf32, #tpu.memory_space<smem>>, %arg3: memref<256x64xf32, #tpu.memory_space<vmem>>, %arg4: memref<2x64xf32, #tpu.memory_space<vmem>>, %arg5: memref<2x1xf32, #tpu.memory_space<vmem>>) attributes {dimension_semantics = [#tpu.dimension_semantics<parallel>], iteration_bounds = array<i64: 1>, scalar_prefetch = 0 : i64, scratch_operands = 0 : i64, tpu.core_type = #tpu.core_type<tc>, window_params = [{transform_indices = @transform_0, window_bounds = array<i64: 2, 1024>}, {transform_indices = @transform_1, window_bounds = array<i64: 6>}, {pipeline_mode = #tpu.pipeline_mode<synchronous>, transform_indices = @transform_2, window_bounds = array<i64: 256, 64>}, {pipeline_mode = #tpu.pipeline_mode<synchronous>, transform_indices = @transform_3, window_bounds = array<i64: 2, 64>}, {transform_indices = @transform_4, window_bounds = array<i64: 2, 1>}]} {
    %c0 = arith.constant 0 : index
    %c0_0 = arith.constant 0 : index
    %0 = vector.load %arg1[%c0, %c0_0] : memref<2x1024xf32, #tpu.memory_space<vmem>>, vector<2x256xf32>
    %c0_1 = arith.constant 0 : index
    %1 = memref.load %arg2[%c0_1] : memref<6xf32, #tpu.memory_space<smem>>
    %2 = vector.broadcast %1 : f32 to vector<2x256xf32>
    %3 = arith.mulf %0, %2 : vector<2x256xf32>
    %c0_2 = arith.constant 0 : index
    %c256 = arith.constant 256 : index
    %4 = vector.load %arg1[%c0_2, %c256] : memref<2x1024xf32, #tpu.memory_space<vmem>>, vector<2x256xf32>
    %c1 = arith.constant 1 : index
    %5 = memref.load %arg2[%c1] : memref<6xf32, #tpu.memory_space<smem>>
    %6 = vector.broadcast %5 : f32 to vector<2x256xf32>
    %7 = arith.mulf %4, %6 : vector<2x256xf32>
    %8 = arith.addf %3, %7 : vector<2x256xf32>
    %c0_3 = arith.constant 0 : index
    %c512 = arith.constant 512 : index
    %9 = vector.load %arg1[%c0_3, %c512] : memref<2x1024xf32, #tpu.memory_space<vmem>>, vector<2x256xf32>
    %c2 = arith.constant 2 : index
    %10 = memref.load %arg2[%c2] : memref<6xf32, #tpu.memory_space<smem>>
    %11 = vector.broadcast %10 : f32 to vector<2x256xf32>
    %12 = arith.mulf %9, %11 : vector<2x256xf32>
    %13 = arith.addf %8, %12 : vector<2x256xf32>
    %c0_4 = arith.constant 0 : index
    %c768 = arith.constant 768 : index
    %14 = vector.load %arg1[%c0_4, %c768] : memref<2x1024xf32, #tpu.memory_space<vmem>>, vector<2x256xf32>
    %c3 = arith.constant 3 : index
    %15 = memref.load %arg2[%c3] : memref<6xf32, #tpu.memory_space<smem>>
    %16 = vector.broadcast %15 : f32 to vector<2x256xf32>
    %17 = arith.mulf %14, %16 : vector<2x256xf32>
    %18 = arith.addf %13, %17 : vector<2x256xf32>
    %c4 = arith.constant 4 : index
    %19 = memref.load %arg2[%c4] : memref<6xf32, #tpu.memory_space<smem>>
    %20 = vector.broadcast %19 : f32 to vector<2x256xf32>
    %21 = arith.addf %18, %20 : vector<2x256xf32>
    %cst = arith.constant 0.000000e+00 : f32
    %22 = vector.broadcast %cst : f32 to vector<2x256xf32>
    %23 = arith.maximumf %21, %22 : vector<2x256xf32>
    %c0_5 = arith.constant 0 : index
    %c0_6 = arith.constant 0 : index
    %24 = vector.load %arg3[%c0_5, %c0_6] : memref<256x64xf32, #tpu.memory_space<vmem>>, vector<256x64xf32>
    %cst_7 = arith.constant dense<0.000000e+00> : vector<2x64xf32>
    %25 = tpu.matmul %23, %24, %cst_7 {dimension_numbers = #tpu.dot_dimension_numbers<[1], [0], [0], [1], [0, 0, 1, 1], [], []>} : vector<2x256xf32>, vector<256x64xf32>, vector<2x64xf32> -> vector<2x64xf32>
    %c0_8 = arith.constant 0 : index
    %c0_9 = arith.constant 0 : index
    %26 = vector.load %arg4[%c0_8, %c0_9] : memref<2x64xf32, #tpu.memory_space<vmem>>, vector<1x64xf32>
    %27 = vector.broadcast %26 : vector<1x64xf32> to vector<2x64xf32>
    %28 = arith.addf %25, %27 : vector<2x64xf32>
    %cst_10 = arith.constant 0.000000e+00 : f32
    %29 = vector.broadcast %cst_10 : f32 to vector<2x64xf32>
    %30 = arith.maximumf %28, %29 : vector<2x64xf32>
    %c1_11 = arith.constant 1 : index
    %c0_12 = arith.constant 0 : index
    %31 = vector.load %arg4[%c1_11, %c0_12] : memref<2x64xf32, #tpu.memory_space<vmem>>, vector<1x64xf32>
    %32 = vector.broadcast %31 : vector<1x64xf32> to vector<2x64xf32>
    %33 = arith.mulf %30, %32 : vector<2x64xf32>
    %cst_13 = arith.constant dense<0.000000e+00> : vector<2xf32>
    %34 = vector.multi_reduction <add>, %33, %cst_13 [1] : vector<2x64xf32> to vector<2xf32>
    %35 = vector.shape_cast %34 : vector<2xf32> to vector<2x1xf32>
    %c5 = arith.constant 5 : index
    %36 = memref.load %arg2[%c5] : memref<6xf32, #tpu.memory_space<smem>>
    %37 = vector.broadcast %36 : f32 to vector<2x1xf32>
    %38 = arith.addf %35, %37 : vector<2x1xf32>
    %39 = math.tanh %38 : vector<2x1xf32>
    %c0_14 = arith.constant 0 : index
    %c0_15 = arith.constant 0 : index
    %40 = vector.load %arg5[%c0_14, %c0_15] : memref<2x1xf32, #tpu.memory_space<vmem>>, vector<2x1xf32>
    tpu.vector_store %arg5[%c0_14, %c0_15], %39 {strides = array<i32>} : memref<2x1xf32, #tpu.memory_space<vmem>>, vector<2x1xf32>,
    return
  }
  func.func @transform_0(%arg0: i32) -> (i32, i32) {
    %c0_i32 = arith.constant 0 : i32
    %c0_i32_0 = arith.constant 0 : i32
    return %arg0, %c0_i32 : i32, i32
  }
  func.func @transform_1(%arg0: i32) -> i32 {
    %c0_i32 = arith.constant 0 : i32
    %c0_i32_0 = arith.constant 0 : i32
    return %c0_i32 : i32
  }
  func.func @transform_2(%arg0: i32) -> (i32, i32) {
    %c0_i32 = arith.constant 0 : i32
    %c0_i32_0 = arith.constant 0 : i32
    %c0_i32_1 = arith.constant 0 : i32
    return %c0_i32, %c0_i32_0 : i32, i32
  }
  func.func @transform_3(%arg0: i32) -> (i32, i32) {
    %c0_i32 = arith.constant 0 : i32
    %c0_i32_0 = arith.constant 0 : i32
    %c0_i32_1 = arith.constant 0 : i32
    return %c0_i32, %c0_i32_0 : i32, i32
  }
  func.func @transform_4(%arg0: i32) -> (i32, i32) {
    %c0_i32 = arith.constant 0 : i32
    %c0_i32_0 = arith.constant 0 : i32
    return %arg0, %c0_i32 : i32, i32
  }
}

</mosaic_0001>

<llo_original>
// kernel: value_head_forward.1
$region0: #{value_head_forward.1}
  #allocation0 [shape = 'u32[]', space=smem, size = 0x4, offset = 0x4, fixed_abs, tag = 'smem constant byte address 0x4 - core index']
  #allocation1 [shape = 'u32[144,128]{1,0:T(1,128)}', space=vmem, size = 0x12000, scoped, tag = 'internal scratch']
  %s0 = inlined_call_operand.vmem [shape: f32[2,1024], index: 0, kind: input, shape index: {}]
  %s1 = inlined_call_operand.vmem [shape: f32[6], index: 1, kind: input, shape index: {}]
  %s2 = inlined_call_operand.vmem [shape: f32[256,64], index: 2, kind: input, shape index: {}]
  %s3 = inlined_call_operand.vmem [shape: f32[2,64], index: 3, kind: input, shape index: {}]
  %s4 = inlined_call_operand.vmem [shape: f32[2,1], index: 4, kind: output, shape index: {}]
  %s5 = sld [smem:[#allocation0]]
  $region30: #{value_head_forward.1} parent=0
    _
  %s7 = ssub.s32 1, %s5
  %s8 = scalar_select 0, %s7, %s5
  $region1: #{value_head_forward.1} parent=0
    #allocation2 [shape = 'u8[512]{0}', space=smem, size = 0x200, scoped, tag = 'input window, operand 1, single buffered']
    #allocation3 [shape = 's32[1]{0}', space=sflag, size = 0x4, scoped, tag = 'scoped memory for value_head_forward.1']
    %9 = vsyncpa [#allocation3], 0
    // Predicated region
    $region2: #{value_head_forward.1} parent=1 // pred_check
      _
    $region3: #{value_head_forward.1} parent=1 // pred_check_branch
      %11 = sbr.rel (0) target = $region5
    $region4: #{value_head_forward.1} parent=1 // pred_region
      _
    $region5: #{value_head_forward.1} parent=1 // pred_fallthru
      _
    // Predicated region
    $region6: #{value_head_forward.1} parent=1 // pred_check
      _
    $region7: #{value_head_forward.1} parent=1 // pred_check_branch
      %13 = sbr.rel (0) target = $region9
    $region8: #{value_head_forward.1} parent=1 // pred_region
      %s15 = ssub.s32 16, 16
      %16 = vsyncadd [#allocation3], %s15
      %s18 = sshll.u32 %s1, 4
      %s19 = int_to_ptr.vmem [resolvable:$true] %s18
      %21 = dma.vmem_to_smem %s19, 16, [#allocation2], [#allocation3]
    $region9: #{value_head_forward.1} parent=1 // pred_fallthru
      _
    // Predicated region
    $region10: #{value_head_forward.1} parent=1 // pred_check
      _
    $region11: #{value_head_forward.1} parent=1 // pred_check_branch
      %23 = sbr.rel (0) target = $region13
    $region12: #{value_head_forward.1} parent=1 // pred_region
      _
    $region13: #{value_head_forward.1} parent=1 // pred_fallthru
      _
    // Predicated region
    $region14: #{value_head_forward.1} parent=1 // pred_check
      _
    $region15: #{value_head_forward.1} parent=1 // pred_check_branch
      %25 = sbr.rel (0) target = $region17
    $region16: #{value_head_forward.1} parent=1 // pred_region
      _
    $region17: #{value_head_forward.1} parent=1 // pred_fallthru
      _
    // Predicated region
    $region18: #{value_head_forward.1} parent=1 // pred_check
      _
    $region19: #{value_head_forward.1} parent=1 // pred_check_branch
      %27 = sbr.rel (0) target = $region21
    $region20: #{value_head_forward.1} parent=1 // pred_region
      %28 = dma.done [#allocation3], 16
    $region21: #{value_head_forward.1} parent=1 // pred_fallthru
      _
    %29 = sfence
    %v30 = vld [vmem:[%s0] sm:$0xf]
    %s31 = sld [smem:[#allocation2]]
    %v32 = vstv %s31
    %v33 = vmul.f32 %v30, %v32
    %v34 = vld [vmem:[%s0 + $0x4] sm:$0xf]
    %s35 = sld [smem:[#allocation2 + $0x1]]
    %v36 = vstv %s35
    %v37 = vmul.f32 %v34, %v36
    %v38 = vadd.f32 %v33, %v37
    %v39 = vld [vmem:[%s0 + $0x8] sm:$0xf]
    %s40 = sld [smem:[#allocation2 + $0x2]]
    %v41 = vstv %s40
    %v42 = vmul.f32 %v39, %v41
    %v43 = vadd.f32 %v38, %v42
    %v44 = vld [vmem:[%s0 + $0xc] sm:$0xf]
    %s45 = sld [smem:[#allocation2 + $0x3]]
    %v46 = vstv %s45
    %v47 = vmul.f32 %v44, %v46
    %v48 = vadd.f32 %v43, %v47
    %s49 = sld [smem:[#allocation2 + $0x4]]
    %v50 = vstv %s49
    %v51 = vadd.f32 %v48, %v50
    %v52 = vmax.f32 %v51, 0.0
    %v53 = vld [vmem:[%s2] sm:$0xff]
    %v54 = vld [vmem:[%s2 + $0x8] sm:$0xff]
    %v55 = vld [vmem:[%s2 + $0x10] sm:$0xff]
    %v56 = vld [vmem:[%s2 + $0x18] sm:$0xff]
    %v57 = vld [vmem:[%s2 + $0x20] sm:$0xff]
    %v58 = vld [vmem:[%s2 + $0x28] sm:$0xff]
    %v59 = vld [vmem:[%s2 + $0x30] sm:$0xff]
    %v60 = vld [vmem:[%s2 + $0x38] sm:$0xff]
    %v61 = vld [vmem:[%s2 + $0x40] sm:$0xff]
    %v62 = vld [vmem:[%s2 + $0x48] sm:$0xff]
    %v63 = vld [vmem:[%s2 + $0x50] sm:$0xff]
    %v64 = vld [vmem:[%s2 + $0x58] sm:$0xff]
    %v65 = vld [vmem:[%s2 + $0x60] sm:$0xff]
    %v66 = vld [vmem:[%s2 + $0x68] sm:$0xff]
    %v67 = vld [vmem:[%s2 + $0x70] sm:$0xff]
    %v68 = vld [vmem:[%s2 + $0x78] sm:$0xff]
    %v69 = vld [vmem:[%s2 + $0x80] sm:$0xff]
    %v70 = vld [vmem:[%s2 + $0x88] sm:$0xff]
    %v71 = vld [vmem:[%s2 + $0x90] sm:$0xff]
    %v72 = vld [vmem:[%s2 + $0x98] sm:$0xff]
    %v73 = vld [vmem:[%s2 + $0xa0] sm:$0xff]
    %v74 = vld [vmem:[%s2 + $0xa8] sm:$0xff]
    %v75 = vld [vmem:[%s2 + $0xb0] sm:$0xff]
    %v76 = vld [vmem:[%s2 + $0xb8] sm:$0xff]
    %v77 = vld [vmem:[%s2 + $0xc0] sm:$0xff]
    %v78 = vld [vmem:[%s2 + $0xc8] sm:$0xff]
    %v79 = vld [vmem:[%s2 + $0xd0] sm:$0xff]
    %v80 = vld [vmem:[%s2 + $0xd8] sm:$0xff]
    %v81 = vld [vmem:[%s2 + $0xe0] sm:$0xff]
    %v82 = vld [vmem:[%s2 + $0xe8] sm:$0xff]
    %v83 = vld [vmem:[%s2 + $0xf0] sm:$0xff]
    %v84 = vld [vmem:[%s2 + $0xf8] sm:$0xff]
    %v85 = vld [vmem:[%s3] sm:$0x1]
    %v86 = vlaneseq
    %v87 = vshrl.u32 %v86, 7
    %v88 = vsub.s32 0, %v87
    %v89 = vrot.slane %v85, %v88
    %v92 = vunpack.c.l.s4 1983009808
    %v93 = vunpack.c.0.s8 %v92
    %v94 = vlaneseq
    %v95 = vshrl.u32 %v94, 7
    %v96 = vsub.s32 %v93, %v95
    %v97 = vrot.slane %v52, %v96
    %v98 = vcombine.high %v97, %v97
    %101 = vmatprep.subr.mxu0 0.0
    %102 = vmatpush1.msra.mxu0 %v68
    %103 = vmatprep.subr.mxu0 0.0
    %104 = vmatpush1.msra.mxu0 %v67
    %105 = vmatprep.subr.mxu0 0.0
    %106 = vmatpush1.msra.mxu0 %v66
    %107 = vmatprep.subr.mxu0 0.0
    %108 = vmatpush1.msra.mxu0 %v65
    %109 = vmatprep.subr.mxu0 0.0
    %110 = vmatpush1.msra.mxu0 %v64
    %111 = vmatprep.subr.mxu0 0.0
    %112 = vmatpush1.msra.mxu0 %v63
    %113 = vmatprep.subr.mxu0 0.0
    %114 = vmatpush1.msra.mxu0 %v62
    %115 = vmatprep.subr.mxu0 0.0
    %116 = vmatpush1.msra.mxu0 %v61
    %117 = vmatprep.subr.mxu0 0.0
    %118 = vmatpush1.msra.mxu0 %v60
    %119 = vmatprep.subr.mxu0 0.0
    %120 = vmatpush1.msra.mxu0 %v59
    %121 = vmatprep.subr.mxu0 0.0
    %122 = vmatpush1.msra.mxu0 %v58
    %123 = vmatprep.subr.mxu0 0.0
    %124 = vmatpush1.msra.mxu0 %v57
    %125 = vmatprep.subr.mxu0 0.0
    %126 = vmatpush1.msra.mxu0 %v56
    %127 = vmatprep.subr.mxu0 0.0
    %128 = vmatpush1.msra.mxu0 %v55
    %129 = vmatprep.subr.mxu0 0.0
    %130 = vmatpush1.msra.mxu0 %v54
    %131 = vmatprep.subr.mxu0 0.0
    %132 = vmatpush1.msra.mxu0 %v53
    %133 = vmatprep.subr.mxu0 0.0
    %134 = vmatpush2.msra.mxu0 %v84
    %135 = vmatprep.subr.mxu0 0.0
    %136 = vmatpush2.msra.mxu0 %v83
    %137 = vmatprep.subr.mxu0 0.0
    %138 = vmatpush2.msra.mxu0 %v82
    %139 = vmatprep.subr.mxu0 0.0
    %140 = vmatpush2.msra.mxu0 %v81
    %141 = vmatprep.subr.mxu0 0.0
    %142 = vmatpush2.msra.mxu0 %v80
    %143 = vmatprep.subr.mxu0 0.0
    %144 = vmatpush2.msra.mxu0 %v79
    %145 = vmatprep.subr.mxu0 0.0
    %146 = vmatpush2.msra.mxu0 %v78
    %147 = vmatprep.subr.mxu0 0.0
    %148 = vmatpush2.msra.mxu0 %v77
    %149 = vmatprep.subr.mxu0 0.0
    %150 = vmatpush2.msra.mxu0 %v76
    %151 = vmatprep.subr.mxu0 0.0
    %152 = vmatpush2.msra.mxu0 %v75
    %153 = vmatprep.subr.mxu0 0.0
    %154 = vmatpush2.msra.mxu0 %v74
    %155 = vmatprep.subr.mxu0 0.0
    %156 = vmatpush2.msra.mxu0 %v73
    %157 = vmatprep.subr.mxu0 0.0
    %158 = vmatpush2.msra.mxu0 %v72
    %159 = vmatprep.subr.mxu0 0.0
    %160 = vmatpush2.msra.mxu0 %v71
    %161 = vmatprep.subr.mxu0 0.0
    %162 = vmatpush2.msra.mxu0 %v70
    %163 = vmatprep.subr.mxu0 0.0
    %164 = vmatpush2.msra.mxu0 %v69
    %165 = vmatprep.mubr.f32.mxu0 %v98
    %166 = vmatmul.mubr.f32.gmra.mxu0 %v97
    %v167 = vpop.f32.mrf.mxu0
    %v168 = vadd.f32 %v89, %v167
    %v169 = vpop.f32.mrf.mxu0
    %170 = vdwg.mxu0
    %v171 = vmax.f32 %v168, 0.0
    %v172 = vld [vmem:[%s3 + $0x1] sm:$0x1]
    %v173 = vlaneseq
    %v174 = vshrl.u32 %v173, 7
    %v175 = vsub.s32 0, %v174
    %v176 = vrot.slane %v172, %v175
    %v177 = vmul.f32 %v171, %v176
    %vm178 = vcmask 517120
    %v179 = vsel %vm178, %v177, 0.0
    %180 = vadd.xlane.f32.xlu0 %v179
    %v181 = vpop.xlane.xlu0 %180
    %s182 = sld [smem:[#allocation2 + $0x5]]
    %v183 = vstv %s182
    %v184 = vadd.f32 %v181, %v183
    %v185 = vtanh.pop %v184
    %vm186 = vcmask 1024
    %187 = vst.msk [vmem:[%s4] sm:$0x3] %vm186, %v185
    // Predicated region
    $region22: #{value_head_forward.1} parent=1 // pred_check
      _
    $region23: #{value_head_forward.1} parent=1 // pred_check_branch
      %189 = sbr.rel (0) target = $region25
    $region24: #{value_head_forward.1} parent=1 // pred_region
      _
    $region25: #{value_head_forward.1} parent=1 // pred_fallthru
      _
    // Predicated region
    $region26: #{value_head_forward.1} parent=1 // pred_check
      _
    $region27: #{value_head_forward.1} parent=1 // pred_check_branch
      %191 = sbr.rel (0) target = $region29
    $region28: #{value_head_forward.1} parent=1 // pred_region
      _
    $region29: #{value_head_forward.1} parent=1 // pred_fallthru
      _
    %192 = vsyncpa [#allocation3], 1

</llo_original>
